<compile_context>
chip_gen: v5e
topology: v5e:2x2
jax: 0.10.0
libtpu: 0.0.40
codegen_flags: <defaults>
</compile_context>

<pallas_src>
from functools import partial

import jax
import jax.numpy as jnp
from jax.experimental import pallas as pl
from jax.experimental.pallas import tpu as pltpu

# ----------------------------- config --------------------------------------
SELF_AWARENESS_DIMS = 64
REFLECTION_LAYERS = 4
INTEGRATION_FACTOR = 0.3


# ----------------------------- kernel --------------------------------------
def _consciousness_kernel(
    states_ref,          # (2, B, D)        f32   [0]=internal_state, [1]=external_input
    w_sq_ref,            # ((2L+1)*D, D)    bf16  rows [l*D:(l+1)*D]: Ws_0..Ws_{L-1}, Wr_0..Wr_{L-1}, Wi
    w_ext_ref,           # (D, L*D)         bf16  column block l == We_l
    bias_ref,            # (2L+1, B, D)     f32   pre-broadcast biases
    out_ref,             # (B, 4*D)         f32   [cons | self_rep | reflection | gate]
    *,
    num_layers: int,
    integration_factor: float,
):
    D = states_ref.shape[2]
    L = num_layers
    bf16 = jnp.bfloat16
    f32 = jnp.float32

    internal = states_ref[0]                          # (B, D) f32
    external = states_ref[1]                          # (B, D) f32

    # Hoisted external projection: ONE wide (B,D)@(D,L*D) matmul, computed once
    # and sliced per layer -> off the dependent critical path.
    ext_proj = jnp.dot(external.astype(bf16), w_ext_ref[...],
                       preferred_element_type=f32)    # (B, L*D)

    # --- SelfAwarenessModel: L x (Linear + tanh) over internal_state ---------
    x = internal
    for l in range(L):                                # static unrolled (L small)
        w = w_sq_ref[l * D:(l + 1) * D, :]            # free static row slice
        x = jnp.tanh(
            jnp.dot(x.astype(bf16), w, preferred_element_type=f32) + bias_ref[l]
        )
    self_rep = x

    # --- ReflectionProcessor --------------------------------------------------
    r = x
    for l in range(L):
        w = w_sq_ref[(L + l) * D:(L + l + 1) * D, :]
        r = jnp.tanh(
            jnp.dot(r.astype(bf16), w, preferred_element_type=f32)
            + ext_proj[:, l * D:(l + 1) * D]
            + bias_ref[L + l]
        )

    # --- IntegrationNetwork: gated residual integration (context=None) -------
    w_int = w_sq_ref[2 * L * D:(2 * L + 1) * D, :]
    gate = jax.nn.sigmoid(
        jnp.dot(r.astype(bf16), w_int, preferred_element_type=f32) + bias_ref[2 * L]
    )
    alpha = jnp.float32(integration_factor)
    cons = alpha * (gate * r) + (jnp.float32(1.0) - alpha) * r

    # Lane-dense (B, 4*D) output slab, static sub-slice stores (no concat).
    out_ref[:, 0:D] = cons
    out_ref[:, D:2 * D] = self_rep
    out_ref[:, 2 * D:3 * D] = r
    out_ref[:, 3 * D:4 * D] = gate                    # filler slot; wrapper ignores


# ----------------------------- params ---------------------------------------
def init_params(key, batch, dims=SELF_AWARENESS_DIMS, layers=REFLECTION_LAYERS):
    """Deterministic synthetic parameter init (not a checkpoint load).

    Returns (packed_params, raw_f32_params). The packed dict is what the kernel
    consumes; the raw dict keeps plain f32 weights for the f32 reference check.
    """
    ks = jax.random.split(key, 7)
    scale = 1.0 / jnp.sqrt(jnp.float32(dims))

    w_self = jax.random.normal(ks[0], (layers, dims, dims), jnp.float32) * scale
    b_self = jax.random.normal(ks[1], (layers, dims), jnp.float32) * 0.01
    w_refl_r = jax.random.normal(ks[2], (layers, dims, dims), jnp.float32) * scale
    w_refl_e = jax.random.normal(ks[3], (layers, dims, dims), jnp.float32) * scale
    b_refl = jax.random.normal(ks[4], (layers, dims), jnp.float32) * 0.01
    w_int = jax.random.normal(ks[5], (dims, dims), jnp.float32) * scale
    b_int = jax.random.normal(ks[6], (1, dims), jnp.float32) * 0.01

    # One bf16 slab of all square weights: row block l is layer l
    # (order: Ws_0..Ws_{L-1}, Wr_0..Wr_{L-1}, Wi).
    w_sq = jnp.concatenate(
        [w_self.reshape(layers * dims, dims),
         w_refl_r.reshape(layers * dims, dims),
         w_int],
        axis=0,
    ).astype(jnp.bfloat16)                                  # ((2L+1)*D, D)

    # External-projection weights packed as (D, L*D): column block l == We_l.
    w_ext = jnp.transpose(w_refl_e, (1, 0, 2)).reshape(dims, layers * dims)
    w_ext = w_ext.astype(jnp.bfloat16)

    # Biases: (2L+1, D) f32 + a pre-broadcast (2L+1, B, D) copy (~18 KiB) so
    # the in-kernel adds are plain VPU adds (no broadcast in the chain).
    bias = jnp.concatenate([b_self, b_refl, b_int], axis=0)             # (2L+1, D)
    bias_b = jnp.broadcast_to(bias[:, None, :],
                              (2 * layers + 1, batch, dims)).astype(jnp.float32)
    bias_b = jnp.array(bias_b)   # materialize

    packed = {"w_sq": w_sq, "w_ext": w_ext, "bias": bias, "bias_b": bias_b}
    raw = {"w_self": w_self, "b_self": b_self,
           "w_refl_r": w_refl_r, "w_refl_e": w_refl_e, "b_refl": b_refl,
           "w_int": w_int, "b_int": b_int}
    return packed, raw


# ----------------------------- wrapper ---------------------------------------
@partial(jax.jit, static_argnames=("layers", "integration_factor"))
def consciousness_forward(
    external_input,          # (B, D) f32
    internal_state,          # (B, D) f32
    params,
    layers=REFLECTION_LAYERS,
    integration_factor=INTEGRATION_FACTOR,
):
    B, D = external_input.shape
    L = layers

    # Stack the two activation inputs into one (2, B, D) DMA.
    states = jnp.stack([internal_state, external_input], axis=0)

    vmem_spec = pl.BlockSpec(memory_space=pltpu.MemorySpace.VMEM)

    # Advisory cost estimate: (2L+1) square matmuls + one hoisted (B,D)x(D,L*D),
    # (2L+1) transcendental sweeps, and the full (tiny) input/output traffic.
    flops = 2 * B * D * D * (2 * L + 1) + 2 * B * D * (L * D)
    transcendentals = B * D * (2 * L + 1)
    bytes_accessed = (
        2 * B * D * 4                     # states (f32)
        + (2 * L + 1) * D * D * 2         # w_sq (bf16)
        + D * L * D * 2                   # w_ext (bf16)
        + (2 * L + 1) * B * D * 4         # bias_b (f32)
        + B * 4 * D * 4                   # output (f32)
    )

    kernel = partial(
        _consciousness_kernel,
        num_layers=L,
        integration_factor=integration_factor,
    )

    packed = pl.pallas_call(
        kernel,
        out_shape=jax.ShapeDtypeStruct((B, 4 * D), jnp.float32),
        in_specs=[vmem_spec] * 4,
        out_specs=vmem_spec,
        cost_estimate=pl.CostEstimate(
            flops=flops,
            transcendentals=transcendentals,
            bytes_accessed=bytes_accessed,
        ),
    )(states, params["w_sq"], params["w_ext"], params["bias_b"])

    return {
        "consciousness_state": packed[:, 0:D],
        "self_representation": packed[:, D:2 * D],
        "reflection": packed[:, 2 * D:3 * D],
    }


# ----------------------- references ------------------------------------------
def _reference_forward_bf16(external_input, internal_state, params,
                            layers=REFLECTION_LAYERS, alpha=INTEGRATION_FACTOR):
    """Mirrors the kernel numerics exactly (bf16 weights/inputs, f32 accumulate)."""
    D = internal_state.shape[1]
    L = layers
    bf16, f32 = jnp.bfloat16, jnp.float32
    w_sq, w_ext, bias = params["w_sq"], params["w_ext"], params["bias"]

    x = internal_state
    for l in range(L):
        x = jnp.tanh(
            jnp.dot(x.astype(bf16), w_sq[l * D:(l + 1) * D, :],
                    preferred_element_type=f32) + bias[l][None, :])
    r = x
    for l in range(L):
        r = jnp.tanh(
            jnp.dot(r.astype(bf16), w_sq[(L + l) * D:(L + l + 1) * D, :],
                    preferred_element_type=f32)
            + jnp.dot(external_input.astype(bf16), w_ext[:, l * D:(l + 1) * D],
                      preferred_element_type=f32)
            + bias[L + l][None, :])
    gate = jax.nn.sigmoid(
        jnp.dot(r.astype(bf16), w_sq[2 * L * D:(2 * L + 1) * D, :],
                preferred_element_type=f32) + bias[2 * L][None, :])
    cons = alpha * (gate * r) + (1.0 - alpha) * r
    return {"consciousness_state": cons, "self_representation": x, "reflection": r}


def _reference_forward_f32(external_input, internal_state, raw,
                           layers=REFLECTION_LAYERS, alpha=INTEGRATION_FACTOR):
    """True f32 reference (original module numerics, no bf16 quantization)."""
    x = internal_state
    for l in range(layers):
        x = jnp.tanh(x @ raw["w_self"][l] + raw["b_self"][l][None, :])
    r = x
    for l in range(layers):
        r = jnp.tanh(r @ raw["w_refl_r"][l]
                     + external_input @ raw["w_refl_e"][l]
                     + raw["b_refl"][l][None, :])
    gate = jax.nn.sigmoid(r @ raw["w_int"] + raw["b_int"][0][None, :])
    cons = alpha * (gate * r) + (1.0 - alpha) * r
    return {"consciousness_state": cons, "self_representation": x, "reflection": r}


# ----------------------------- main -------------------------------------------
if __name__ == "__main__":
    B, D = 8, SELF_AWARENESS_DIMS

    key = jax.random.PRNGKey(0)
    k_ext, k_int, k_params = jax.random.split(key, 3)
    external_input = jax.random.normal(k_ext, (B, D), jnp.float32)
    internal_state = jax.random.normal(k_int, (B, D), jnp.float32)
    params, raw = init_params(k_params, batch=B)

    out = consciousness_forward(external_input, internal_state, params)
    out = jax.tree_util.tree_map(jax.block_until_ready, out)

    names = ("consciousness_state", "self_representation", "reflection")

    # Tight check vs a reference that matches the kernel's bf16/f32 scheme.
    ref_b = _reference_forward_bf16(external_input, internal_state, params)
    for name in names:
        assert jnp.allclose(out[name], ref_b[name], atol=2e-3, rtol=2e-3), name

    # Drift check vs the true f32 module numerics (documents bf16-weight
    # quantization accumulated over 2L+1 dependent layers).
    ref_f = _reference_forward_f32(external_input, internal_state, raw)
    for name in names:
        assert jnp.allclose(out[name], ref_f[name], atol=5e-2, rtol=5e-2), name

    print("KERNEL_OK")
</pallas_src>

<mosaic_0001>
module attributes {stable_mosaic.version = 11 : i64} {
  func.func @_consciousness_kernel(%arg0: memref<2x8x64xf32, #tpu.memory_space<vmem>>, %arg1: memref<576x64xbf16, #tpu.memory_space<vmem>>, %arg2: memref<64x256xbf16, #tpu.memory_space<vmem>>, %arg3: memref<9x8x64xf32, #tpu.memory_space<vmem>>, %arg4: memref<8x256xf32, #tpu.memory_space<vmem>>) attributes {dimension_semantics = [], scalar_prefetch = 0 : i64, scratch_operands = 0 : i64, tpu.core_type = #tpu.core_type<tc>} {
    %c0 = arith.constant 0 : index
    %c0_0 = arith.constant 0 : index
    %c0_1 = arith.constant 0 : index
    %0 = vector.load %arg0[%c0, %c0_0, %c0_1] : memref<2x8x64xf32, #tpu.memory_space<vmem>>, vector<1x8x64xf32>
    %1 = vector.shape_cast %0 : vector<1x8x64xf32> to vector<8x64xf32>
    %c1 = arith.constant 1 : index
    %c0_2 = arith.constant 0 : index
    %c0_3 = arith.constant 0 : index
    %2 = vector.load %arg0[%c1, %c0_2, %c0_3] : memref<2x8x64xf32, #tpu.memory_space<vmem>>, vector<1x8x64xf32>
    %3 = vector.shape_cast %2 : vector<1x8x64xf32> to vector<8x64xf32>
    %4 = arith.truncf %3 : vector<8x64xf32> to vector<8x64xbf16>
    %c0_4 = arith.constant 0 : index
    %c0_5 = arith.constant 0 : index
    %5 = vector.load %arg2[%c0_4, %c0_5] : memref<64x256xbf16, #tpu.memory_space<vmem>>, vector<64x256xbf16>
    %cst = arith.constant dense<0.000000e+00> : vector<8x256xf32>
    %6 = tpu.matmul %4, %5, %cst {dimension_numbers = #tpu.dot_dimension_numbers<[1], [0], [0], [1], [0, 0, 1, 1], [], []>} : vector<8x64xbf16>, vector<64x256xbf16>, vector<8x256xf32> -> vector<8x256xf32>
    %c0_6 = arith.constant 0 : index
    %c0_7 = arith.constant 0 : index
    %7 = vector.load %arg1[%c0_6, %c0_7] : memref<576x64xbf16, #tpu.memory_space<vmem>>, vector<64x64xbf16>
    %8 = arith.truncf %1 : vector<8x64xf32> to vector<8x64xbf16>
    %cst_8 = arith.constant dense<0.000000e+00> : vector<8x64xf32>
    %9 = tpu.matmul %8, %7, %cst_8 {dimension_numbers = #tpu.dot_dimension_numbers<[1], [0], [0], [1], [0, 0, 1, 1], [], []>} : vector<8x64xbf16>, vector<64x64xbf16>, vector<8x64xf32> -> vector<8x64xf32>
    %c0_9 = arith.constant 0 : index
    %c0_10 = arith.constant 0 : index
    %c0_11 = arith.constant 0 : index
    %10 = vector.load %arg3[%c0_9, %c0_10, %c0_11] : memref<9x8x64xf32, #tpu.memory_space<vmem>>, vector<1x8x64xf32>
    %11 = vector.shape_cast %10 : vector<1x8x64xf32> to vector<8x64xf32>
    %12 = arith.addf %9, %11 : vector<8x64xf32>
    %13 = math.tanh %12 : vector<8x64xf32>
    %c64 = arith.constant 64 : index
    %c0_12 = arith.constant 0 : index
    %14 = vector.load %arg1[%c64, %c0_12] : memref<576x64xbf16, #tpu.memory_space<vmem>>, vector<64x64xbf16>
    %15 = arith.truncf %13 : vector<8x64xf32> to vector<8x64xbf16>
    %cst_13 = arith.constant dense<0.000000e+00> : vector<8x64xf32>
    %16 = tpu.matmul %15, %14, %cst_13 {dimension_numbers = #tpu.dot_dimension_numbers<[1], [0], [0], [1], [0, 0, 1, 1], [], []>} : vector<8x64xbf16>, vector<64x64xbf16>, vector<8x64xf32> -> vector<8x64xf32>
    %c1_14 = arith.constant 1 : index
    %c0_15 = arith.constant 0 : index
    %c0_16 = arith.constant 0 : index
    %17 = vector.load %arg3[%c1_14, %c0_15, %c0_16] : memref<9x8x64xf32, #tpu.memory_space<vmem>>, vector<1x8x64xf32>
    %18 = vector.shape_cast %17 : vector<1x8x64xf32> to vector<8x64xf32>
    %19 = arith.addf %16, %18 : vector<8x64xf32>
    %20 = math.tanh %19 : vector<8x64xf32>
    %c128 = arith.constant 128 : index
    %c0_17 = arith.constant 0 : index
    %21 = vector.load %arg1[%c128, %c0_17] : memref<576x64xbf16, #tpu.memory_space<vmem>>, vector<64x64xbf16>
    %22 = arith.truncf %20 : vector<8x64xf32> to vector<8x64xbf16>
    %cst_18 = arith.constant dense<0.000000e+00> : vector<8x64xf32>
    %23 = tpu.matmul %22, %21, %cst_18 {dimension_numbers = #tpu.dot_dimension_numbers<[1], [0], [0], [1], [0, 0, 1, 1], [], []>} : vector<8x64xbf16>, vector<64x64xbf16>, vector<8x64xf32> -> vector<8x64xf32>
    %c2 = arith.constant 2 : index
    %c0_19 = arith.constant 0 : index
    %c0_20 = arith.constant 0 : index
    %24 = vector.load %arg3[%c2, %c0_19, %c0_20] : memref<9x8x64xf32, #tpu.memory_space<vmem>>, vector<1x8x64xf32>
    %25 = vector.shape_cast %24 : vector<1x8x64xf32> to vector<8x64xf32>
    %26 = arith.addf %23, %25 : vector<8x64xf32>
    %27 = math.tanh %26 : vector<8x64xf32>
    %c192 = arith.constant 192 : index
    %c0_21 = arith.constant 0 : index
    %28 = vector.load %arg1[%c192, %c0_21] : memref<576x64xbf16, #tpu.memory_space<vmem>>, vector<64x64xbf16>
    %29 = arith.truncf %27 : vector<8x64xf32> to vector<8x64xbf16>
    %cst_22 = arith.constant dense<0.000000e+00> : vector<8x64xf32>
    %30 = tpu.matmul %29, %28, %cst_22 {dimension_numbers = #tpu.dot_dimension_numbers<[1], [0], [0], [1], [0, 0, 1, 1], [], []>} : vector<8x64xbf16>, vector<64x64xbf16>, vector<8x64xf32> -> vector<8x64xf32>
    %c3 = arith.constant 3 : index
    %c0_23 = arith.constant 0 : index
    %c0_24 = arith.constant 0 : index
    %31 = vector.load %arg3[%c3, %c0_23, %c0_24] : memref<9x8x64xf32, #tpu.memory_space<vmem>>, vector<1x8x64xf32>
    %32 = vector.shape_cast %31 : vector<1x8x64xf32> to vector<8x64xf32>
    %33 = arith.addf %30, %32 : vector<8x64xf32>
    %34 = math.tanh %33 : vector<8x64xf32>
    %c256 = arith.constant 256 : index
    %c0_25 = arith.constant 0 : index
    %35 = vector.load %arg1[%c256, %c0_25] : memref<576x64xbf16, #tpu.memory_space<vmem>>, vector<64x64xbf16>
    %36 = arith.truncf %34 : vector<8x64xf32> to vector<8x64xbf16>
    %cst_26 = arith.constant dense<0.000000e+00> : vector<8x64xf32>
    %37 = tpu.matmul %36, %35, %cst_26 {dimension_numbers = #tpu.dot_dimension_numbers<[1], [0], [0], [1], [0, 0, 1, 1], [], []>} : vector<8x64xbf16>, vector<64x64xbf16>, vector<8x64xf32> -> vector<8x64xf32>
    %38 = vector.extract_strided_slice %6 {offsets = [0, 0], sizes = [8, 64], strides = [1, 1]} : vector<8x256xf32> to vector<8x64xf32>
    %39 = arith.addf %37, %38 : vector<8x64xf32>
    %c4 = arith.constant 4 : index
    %c0_27 = arith.constant 0 : index
    %c0_28 = arith.constant 0 : index
    %40 = vector.load %arg3[%c4, %c0_27, %c0_28] : memref<9x8x64xf32, #tpu.memory_space<vmem>>, vector<1x8x64xf32>
    %41 = vector.shape_cast %40 : vector<1x8x64xf32> to vector<8x64xf32>
    %42 = arith.addf %39, %41 : vector<8x64xf32>
    %43 = math.tanh %42 : vector<8x64xf32>
    %c320 = arith.constant 320 : index
    %c0_29 = arith.constant 0 : index
    %44 = vector.load %arg1[%c320, %c0_29] : memref<576x64xbf16, #tpu.memory_space<vmem>>, vector<64x64xbf16>
    %45 = arith.truncf %43 : vector<8x64xf32> to vector<8x64xbf16>
    %cst_30 = arith.constant dense<0.000000e+00> : vector<8x64xf32>
    %46 = tpu.matmul %45, %44, %cst_30 {dimension_numbers = #tpu.dot_dimension_numbers<[1], [0], [0], [1], [0, 0, 1, 1], [], []>} : vector<8x64xbf16>, vector<64x64xbf16>, vector<8x64xf32> -> vector<8x64xf32>
    %47 = vector.extract_strided_slice %6 {offsets = [0, 64], sizes = [8, 64], strides = [1, 1]} : vector<8x256xf32> to vector<8x64xf32>
    %48 = arith.addf %46, %47 : vector<8x64xf32>
    %c5 = arith.constant 5 : index
    %c0_31 = arith.constant 0 : index
    %c0_32 = arith.constant 0 : index
    %49 = vector.load %arg3[%c5, %c0_31, %c0_32] : memref<9x8x64xf32, #tpu.memory_space<vmem>>, vector<1x8x64xf32>
    %50 = vector.shape_cast %49 : vector<1x8x64xf32> to vector<8x64xf32>
    %51 = arith.addf %48, %50 : vector<8x64xf32>
    %52 = math.tanh %51 : vector<8x64xf32>
    %c384 = arith.constant 384 : index
    %c0_33 = arith.constant 0 : index
    %53 = vector.load %arg1[%c384, %c0_33] : memref<576x64xbf16, #tpu.memory_space<vmem>>, vector<64x64xbf16>
    %54 = arith.truncf %52 : vector<8x64xf32> to vector<8x64xbf16>
    %cst_34 = arith.constant dense<0.000000e+00> : vector<8x64xf32>
    %55 = tpu.matmul %54, %53, %cst_34 {dimension_numbers = #tpu.dot_dimension_numbers<[1], [0], [0], [1], [0, 0, 1, 1], [], []>} : vector<8x64xbf16>, vector<64x64xbf16>, vector<8x64xf32> -> vector<8x64xf32>
    %56 = vector.extract_strided_slice %6 {offsets = [0, 128], sizes = [8, 64], strides = [1, 1]} : vector<8x256xf32> to vector<8x64xf32>
    %57 = arith.addf %55, %56 : vector<8x64xf32>
    %c6 = arith.constant 6 : index
    %c0_35 = arith.constant 0 : index
    %c0_36 = arith.constant 0 : index
    %58 = vector.load %arg3[%c6, %c0_35, %c0_36] : memref<9x8x64xf32, #tpu.memory_space<vmem>>, vector<1x8x64xf32>
    %59 = vector.shape_cast %58 : vector<1x8x64xf32> to vector<8x64xf32>
    %60 = arith.addf %57, %59 : vector<8x64xf32>
    %61 = math.tanh %60 : vector<8x64xf32>
    %c448 = arith.constant 448 : index
    %c0_37 = arith.constant 0 : index
    %62 = vector.load %arg1[%c448, %c0_37] : memref<576x64xbf16, #tpu.memory_space<vmem>>, vector<64x64xbf16>
    %63 = arith.truncf %61 : vector<8x64xf32> to vector<8x64xbf16>
    %cst_38 = arith.constant dense<0.000000e+00> : vector<8x64xf32>
    %64 = tpu.matmul %63, %62, %cst_38 {dimension_numbers = #tpu.dot_dimension_numbers<[1], [0], [0], [1], [0, 0, 1, 1], [], []>} : vector<8x64xbf16>, vector<64x64xbf16>, vector<8x64xf32> -> vector<8x64xf32>
    %65 = vector.extract_strided_slice %6 {offsets = [0, 192], sizes = [8, 64], strides = [1, 1]} : vector<8x256xf32> to vector<8x64xf32>
    %66 = arith.addf %64, %65 : vector<8x64xf32>
    %c7 = arith.constant 7 : index
    %c0_39 = arith.constant 0 : index
    %c0_40 = arith.constant 0 : index
    %67 = vector.load %arg3[%c7, %c0_39, %c0_40] : memref<9x8x64xf32, #tpu.memory_space<vmem>>, vector<1x8x64xf32>
    %68 = vector.shape_cast %67 : vector<1x8x64xf32> to vector<8x64xf32>
    %69 = arith.addf %66, %68 : vector<8x64xf32>
    %70 = math.tanh %69 : vector<8x64xf32>
    %c512 = arith.constant 512 : index
    %c0_41 = arith.constant 0 : index
    %71 = vector.load %arg1[%c512, %c0_41] : memref<576x64xbf16, #tpu.memory_space<vmem>>, vector<64x64xbf16>
    %72 = arith.truncf %70 : vector<8x64xf32> to vector<8x64xbf16>
    %cst_42 = arith.constant dense<0.000000e+00> : vector<8x64xf32>
    %73 = tpu.matmul %72, %71, %cst_42 {dimension_numbers = #tpu.dot_dimension_numbers<[1], [0], [0], [1], [0, 0, 1, 1], [], []>} : vector<8x64xbf16>, vector<64x64xbf16>, vector<8x64xf32> -> vector<8x64xf32>
    %c8 = arith.constant 8 : index
    %c0_43 = arith.constant 0 : index
    %c0_44 = arith.constant 0 : index
    %74 = vector.load %arg3[%c8, %c0_43, %c0_44] : memref<9x8x64xf32, #tpu.memory_space<vmem>>, vector<1x8x64xf32>
    %75 = vector.shape_cast %74 : vector<1x8x64xf32> to vector<8x64xf32>
    %76 = arith.addf %73, %75 : vector<8x64xf32>
    %77 = arith.negf %76 : vector<8x64xf32>
    %78 = math.exp %77 : vector<8x64xf32>
    %cst_45 = arith.constant 1.000000e+00 : f32
    %79 = vector.broadcast %cst_45 : f32 to vector<8x64xf32>
    %80 = arith.addf %79, %78 : vector<8x64xf32>
    %81 = arith.divf %79, %80 : vector<8x64xf32>
    %82 = arith.mulf %81, %70 : vector<8x64xf32>
    %cst_46 = arith.constant 3.000000e-01 : f32
    %83 = vector.broadcast %cst_46 : f32 to vector<8x64xf32>
    %84 = arith.mulf %83, %82 : vector<8x64xf32>
    %cst_47 = arith.constant 1.000000e+00 : f32
    %cst_48 = arith.constant 3.000000e-01 : f32
    %85 = arith.subf %cst_47, %cst_48 : f32
    %86 = vector.broadcast %85 : f32 to vector<8x64xf32>
    %87 = arith.mulf %86, %70 : vector<8x64xf32>
    %88 = arith.addf %84, %87 : vector<8x64xf32>
    %c0_49 = arith.constant 0 : index
    %c0_50 = arith.constant 0 : index
    %89 = vector.load %arg4[%c0_49, %c0_50] : memref<8x256xf32, #tpu.memory_space<vmem>>, vector<8x64xf32>
    tpu.vector_store %arg4[%c0_49, %c0_50], %88 {strides = array<i32>} : memref<8x256xf32, #tpu.memory_space<vmem>>, vector<8x64xf32>,
    %c0_51 = arith.constant 0 : index
    %c64_52 = arith.constant 64 : index
    %90 = vector.load %arg4[%c0_51, %c64_52] : memref<8x256xf32, #tpu.memory_space<vmem>>, vector<8x64xf32>
    tpu.vector_store %arg4[%c0_51, %c64_52], %34 {strides = array<i32>} : memref<8x256xf32, #tpu.memory_space<vmem>>, vector<8x64xf32>,
    %c0_53 = arith.constant 0 : index
    %c128_54 = arith.constant 128 : index
    %91 = vector.load %arg4[%c0_53, %c128_54] : memref<8x256xf32, #tpu.memory_space<vmem>>, vector<8x64xf32>
    tpu.vector_store %arg4[%c0_53, %c128_54], %70 {strides = array<i32>} : memref<8x256xf32, #tpu.memory_space<vmem>>, vector<8x64xf32>,
    %c0_55 = arith.constant 0 : index
    %c192_56 = arith.constant 192 : index
    %92 = vector.load %arg4[%c0_55, %c192_56] : memref<8x256xf32, #tpu.memory_space<vmem>>, vector<8x64xf32>
    tpu.vector_store %arg4[%c0_55, %c192_56], %81 {strides = array<i32>} : memref<8x256xf32, #tpu.memory_space<vmem>>, vector<8x64xf32>,
    return
  }
}

</mosaic_0001>

<llo_original>
// kernel: consciousness_forward.1
$region0: #{consciousness_forward.1}
  #allocation0 [shape = 'u32[]', space=smem, size = 0x4, offset = 0x4, fixed_abs, tag = 'smem constant byte address 0x4 - core index']
  #allocation1 [shape = 'u32[72,128]{1,0:T(1,128)}', space=vmem, size = 0x9000, scoped, tag = 'internal scratch']
  %s0 = inlined_call_operand.vmem [shape: f32[2,8,64], index: 0, kind: input, shape index: {}]
  %s1 = inlined_call_operand.vmem [shape: bf16[576,64], index: 1, kind: input, shape index: {}]
  %s2 = inlined_call_operand.vmem [shape: bf16[64,256], index: 2, kind: input, shape index: {}]
  %s3 = inlined_call_operand.vmem [shape: f32[9,8,64], index: 3, kind: input, shape index: {}]
  %s4 = inlined_call_operand.vmem [shape: f32[8,256], index: 4, kind: output, shape index: {}]
  %s5 = sld [smem:[#allocation0]]
  $region26: #{consciousness_forward.1} parent=0
    _
  %s7 = ssub.s32 1, %s5
  %s8 = scalar_select 0, %s7, %s5
  // Predicated region
  $region2: #{consciousness_forward.1} parent=0 // pred_check
    _
  $region3: #{consciousness_forward.1} parent=0 // pred_check_branch
    %10 = sbr.rel (0) target = $region5
  $region4: #{consciousness_forward.1} parent=0 // pred_region
    _
  $region5: #{consciousness_forward.1} parent=0 // pred_fallthru
    _
  // Predicated region
  $region6: #{consciousness_forward.1} parent=0 // pred_check
    _
  $region7: #{consciousness_forward.1} parent=0 // pred_check_branch
    %12 = sbr.rel (0) target = $region9
  $region8: #{consciousness_forward.1} parent=0 // pred_region
    _
  $region9: #{consciousness_forward.1} parent=0 // pred_fallthru
    _
  // Predicated region
  $region10: #{consciousness_forward.1} parent=0 // pred_check
    _
  $region11: #{consciousness_forward.1} parent=0 // pred_check_branch
    %14 = sbr.rel (0) target = $region13
  $region12: #{consciousness_forward.1} parent=0 // pred_region
    _
  $region13: #{consciousness_forward.1} parent=0 // pred_fallthru
    _
  // Predicated region
  $region14: #{consciousness_forward.1} parent=0 // pred_check
    _
  $region15: #{consciousness_forward.1} parent=0 // pred_check_branch
    %16 = sbr.rel (0) target = $region17
  $region16: #{consciousness_forward.1} parent=0 // pred_region
    _
  $region17: #{consciousness_forward.1} parent=0 // pred_fallthru
    _
  %v18 = vld [vmem:[%s0] sm:$0xff]
  %s19 = scalar_lea.vmem %s0, 8
  %v20 = vld [vmem:[%s19] sm:$0xff]
  %v21 = vpack.c.bf16 %v20, %v20
  %v22 = vld [vmem:[%s2] sm:$0xff]
  %v23 = vld [vmem:[%s2 + $0x8] sm:$0xff]
  %v24 = vld [vmem:[%s2 + $0x10] sm:$0xff]
  %v25 = vld [vmem:[%s2 + $0x18] sm:$0xff]
  %v26 = vld [vmem:[%s2 + $0x20] sm:$0xff]
  %v27 = vld [vmem:[%s2 + $0x28] sm:$0xff]
  %v28 = vld [vmem:[%s2 + $0x30] sm:$0xff]
  %v29 = vld [vmem:[%s2 + $0x38] sm:$0xff]
  %v38 = vunpack.c.l.b16 %v22
  %v39 = vunpack.c.h.b16 %v22
  %v40 = vunpack.c.l.b16 %v23
  %v41 = vunpack.c.h.b16 %v23
  %v42 = vunpack.c.l.b16 %v24
  %v43 = vunpack.c.h.b16 %v24
  %v44 = vunpack.c.l.b16 %v25
  %v45 = vunpack.c.h.b16 %v25
  %v46 = vunpack.c.l.b16 %v26
  %v47 = vunpack.c.h.b16 %v26
  %v48 = vunpack.c.l.b16 %v27
  %v49 = vunpack.c.h.b16 %v27
  %v50 = vunpack.c.l.b16 %v28
  %v51 = vunpack.c.h.b16 %v28
  %v52 = vunpack.c.l.b16 %v29
  %v53 = vunpack.c.h.b16 %v29
  %v54 = vpack.c.b16 %v40, %v38
  %v55 = vpack.c.b16 %v41, %v39
  %v56 = vpack.c.b16 %v44, %v42
  %v57 = vpack.c.b16 %v45, %v43
  %v58 = vpack.c.b16 %v48, %v46
  %v59 = vpack.c.b16 %v49, %v47
  %v60 = vpack.c.b16 %v52, %v50
  %v61 = vpack.c.b16 %v53, %v51
  %vm70 = vcmask 523264
  %v72 = vsel %vm70, %v21, 0
  %74 = vmatpush.bf16.msra.mxu0 0
  %75 = vmatpush.bf16.msra.mxu0 0
  %76 = vmatpush.bf16.msra.mxu0 0
  %77 = vmatpush.bf16.msra.mxu0 0
  %78 = vmatpush.bf16.msra.mxu0 %v60
  %79 = vmatpush.bf16.msra.mxu0 %v58
  %80 = vmatpush.bf16.msra.mxu0 %v56
  %81 = vmatpush.bf16.msra.mxu0 %v54
  %82 = vmatmul.bf16.gmra.mxu0 %v72
  %v83 = vpop.f32.mrf.mxu0
  %v84 = vadd.f32 0.0, %v83
  %v85 = vpop.f32.mrf.mxu0
  %86 = vdwg.mxu0
  %87 = vmatpush.bf16.msra.mxu0 0
  %88 = vmatpush.bf16.msra.mxu0 0
  %89 = vmatpush.bf16.msra.mxu0 0
  %90 = vmatpush.bf16.msra.mxu0 0
  %91 = vmatpush.bf16.msra.mxu0 %v61
  %92 = vmatpush.bf16.msra.mxu0 %v59
  %93 = vmatpush.bf16.msra.mxu0 %v57
  %94 = vmatpush.bf16.msra.mxu0 %v55
  %95 = vmatmul.bf16.gmra.mxu0 %v72
  %v96 = vpop.f32.mrf.mxu0
  %v97 = vadd.f32 0.0, %v96
  %v98 = vpop.f32.mrf.mxu0
  %99 = vdwg.mxu0
  %v100 = vld [vmem:[%s1] sm:$0xf]
  %v101 = vld [vmem:[%s1 + $0x4] sm:$0xf]
  %v102 = vld [vmem:[%s1 + $0x8] sm:$0xf]
  %v103 = vld [vmem:[%s1 + $0xc] sm:$0xf]
  %v104 = vld [vmem:[%s1 + $0x10] sm:$0xf]
  %v105 = vld [vmem:[%s1 + $0x14] sm:$0xf]
  %v106 = vld [vmem:[%s1 + $0x18] sm:$0xf]
  %v107 = vld [vmem:[%s1 + $0x1c] sm:$0xf]
  %v108 = vpack.c.bf16 %v18, %v18
  %v109 = vld [vmem:[%s3] sm:$0xff]
  %v118 = vunpack.c.l.b16 %v100
  %v119 = vunpack.c.l.b16 %v101
  %v120 = vunpack.c.l.b16 %v102
  %v121 = vunpack.c.l.b16 %v103
  %v122 = vunpack.c.l.b16 %v104
  %v123 = vunpack.c.l.b16 %v105
  %v124 = vunpack.c.l.b16 %v106
  %v125 = vunpack.c.l.b16 %v107
  %v126 = vpack.c.b16 %v119, %v118
  %v127 = vpack.c.b16 %v121, %v120
  %v128 = vpack.c.b16 %v123, %v122
  %v129 = vpack.c.b16 %v125, %v124
  %v135 = vsel %vm70, %v108, 0
  %137 = vmatpush.bf16.msra.mxu0 0
  %138 = vmatpush.bf16.msra.mxu0 0
  %139 = vmatpush.bf16.msra.mxu0 0
  %140 = vmatpush.bf16.msra.mxu0 0
  %141 = vmatpush.bf16.msra.mxu0 %v129
  %142 = vmatpush.bf16.msra.mxu0 %v128
  %143 = vmatpush.bf16.msra.mxu0 %v127
  %144 = vmatpush.bf16.msra.mxu0 %v126
  %145 = vmatmul.bf16.gmra.mxu0 %v135
  %v146 = vpop.f32.mrf.mxu0
  %v147 = vadd.f32 %v109, %v146
  %v148 = vpop.f32.mrf.mxu0
  %149 = vdwg.mxu0
  %v150 = vtanh.pop %v147
  %v151 = vld [vmem:[%s1 + $0x20] sm:$0xf]
  %v152 = vld [vmem:[%s1 + $0x24] sm:$0xf]
  %v153 = vld [vmem:[%s1 + $0x28] sm:$0xf]
  %v154 = vld [vmem:[%s1 + $0x2c] sm:$0xf]
  %v155 = vld [vmem:[%s1 + $0x30] sm:$0xf]
  %v156 = vld [vmem:[%s1 + $0x34] sm:$0xf]
  %v157 = vld [vmem:[%s1 + $0x38] sm:$0xf]
  %v158 = vld [vmem:[%s1 + $0x3c] sm:$0xf]
  %v159 = vpack.c.bf16 %v150, %v150
  %s160 = scalar_lea.vmem %s3, 8
  %v161 = vld [vmem:[%s160] sm:$0xff]
  %v170 = vunpack.c.l.b16 %v151
  %v171 = vunpack.c.l.b16 %v152
  %v172 = vunpack.c.l.b16 %v153
  %v173 = vunpack.c.l.b16 %v154
  %v174 = vunpack.c.l.b16 %v155
  %v175 = vunpack.c.l.b16 %v156
  %v176 = vunpack.c.l.b16 %v157
  %v177 = vunpack.c.l.b16 %v158
  %v178 = vpack.c.b16 %v171, %v170
  %v179 = vpack.c.b16 %v173, %v172
  %v180 = vpack.c.b16 %v175, %v174
  %v181 = vpack.c.b16 %v177, %v176
  %v187 = vsel %vm70, %v159, 0
  %189 = vmatpush.bf16.msra.mxu0 0
  %190 = vmatpush.bf16.msra.mxu0 0
  %191 = vmatpush.bf16.msra.mxu0 0
  %192 = vmatpush.bf16.msra.mxu0 0
  %193 = vmatpush.bf16.msra.mxu0 %v181
  %194 = vmatpush.bf16.msra.mxu0 %v180
  %195 = vmatpush.bf16.msra.mxu0 %v179
  %196 = vmatpush.bf16.msra.mxu0 %v178
  %197 = vmatmul.bf16.gmra.mxu0 %v187
  %v198 = vpop.f32.mrf.mxu0
  %v199 = vadd.f32 %v161, %v198
  %v200 = vpop.f32.mrf.mxu0
  %201 = vdwg.mxu0
  %v202 = vtanh.pop %v199
  %v203 = vld [vmem:[%s1 + $0x40] sm:$0xf]
  %v204 = vld [vmem:[%s1 + $0x44] sm:$0xf]
  %v205 = vld [vmem:[%s1 + $0x48] sm:$0xf]
  %v206 = vld [vmem:[%s1 + $0x4c] sm:$0xf]
  %v207 = vld [vmem:[%s1 + $0x50] sm:$0xf]
  %v208 = vld [vmem:[%s1 + $0x54] sm:$0xf]
  %v209 = vld [vmem:[%s1 + $0x58] sm:$0xf]
  %v210 = vld [vmem:[%s1 + $0x5c] sm:$0xf]
  %v211 = vpack.c.bf16 %v202, %v202
  %s212 = scalar_lea.vmem %s3, 16
  %v213 = vld [vmem:[%s212] sm:$0xff]
  %v222 = vunpack.c.l.b16 %v203
  %v223 = vunpack.c.l.b16 %v204
  %v224 = vunpack.c.l.b16 %v205
  %v225 = vunpack.c.l.b16 %v206
  %v226 = vunpack.c.l.b16 %v207
  %v227 = vunpack.c.l.b16 %v208
  %v228 = vunpack.c.l.b16 %v209
  %v229 = vunpack.c.l.b16 %v210
  %v230 = vpack.c.b16 %v223, %v222
  %v231 = vpack.c.b16 %v225, %v224
  %v232 = vpack.c.b16 %v227, %v226
  %v233 = vpack.c.b16 %v229, %v228
  %v239 = vsel %vm70, %v211, 0
  %241 = vmatpush.bf16.msra.mxu0 0
  %242 = vmatpush.bf16.msra.mxu0 0
  %243 = vmatpush.bf16.msra.mxu0 0
  %244 = vmatpush.bf16.msra.mxu0 0
  %245 = vmatpush.bf16.msra.mxu0 %v233
  %246 = vmatpush.bf16.msra.mxu0 %v232
  %247 = vmatpush.bf16.msra.mxu0 %v231
  %248 = vmatpush.bf16.msra.mxu0 %v230
  %249 = vmatmul.bf16.gmra.mxu0 %v239
  %v250 = vpop.f32.mrf.mxu0
  %v251 = vadd.f32 %v213, %v250
  %v252 = vpop.f32.mrf.mxu0
  %253 = vdwg.mxu0
  %v254 = vtanh.pop %v251
  %v255 = vld [vmem:[%s1 + $0x60] sm:$0xf]
  %v256 = vld [vmem:[%s1 + $0x64] sm:$0xf]
  %v257 = vld [vmem:[%s1 + $0x68] sm:$0xf]
  %v258 = vld [vmem:[%s1 + $0x6c] sm:$0xf]
  %v259 = vld [vmem:[%s1 + $0x70] sm:$0xf]
  %v260 = vld [vmem:[%s1 + $0x74] sm:$0xf]
  %v261 = vld [vmem:[%s1 + $0x78] sm:$0xf]
  %v262 = vld [vmem:[%s1 + $0x7c] sm:$0xf]
  %v263 = vpack.c.bf16 %v254, %v254
  %s264 = scalar_lea.vmem %s3, 24
  %v265 = vld [vmem:[%s264] sm:$0xff]
  %v274 = vunpack.c.l.b16 %v255
  %v275 = vunpack.c.l.b16 %v256
  %v276 = vunpack.c.l.b16 %v257
  %v277 = vunpack.c.l.b16 %v258
  %v278 = vunpack.c.l.b16 %v259
  %v279 = vunpack.c.l.b16 %v260
  %v280 = vunpack.c.l.b16 %v261
  %v281 = vunpack.c.l.b16 %v262
  %v282 = vpack.c.b16 %v275, %v274
  %v283 = vpack.c.b16 %v277, %v276
  %v284 = vpack.c.b16 %v279, %v278
  %v285 = vpack.c.b16 %v281, %v280
  %v291 = vsel %vm70, %v263, 0
  %293 = vmatpush.bf16.msra.mxu0 0
  %294 = vmatpush.bf16.msra.mxu0 0
  %295 = vmatpush.bf16.msra.mxu0 0
  %296 = vmatpush.bf16.msra.mxu0 0
  %297 = vmatpush.bf16.msra.mxu0 %v285
  %298 = vmatpush.bf16.msra.mxu0 %v284
  %299 = vmatpush.bf16.msra.mxu0 %v283
  %300 = vmatpush.bf16.msra.mxu0 %v282
  %301 = vmatmul.bf16.gmra.mxu0 %v291
  %v302 = vpop.f32.mrf.mxu0
  %v303 = vadd.f32 %v265, %v302
  %v304 = vpop.f32.mrf.mxu0
  %305 = vdwg.mxu0
  %v306 = vtanh.pop %v303
  %v307 = vld [vmem:[%s1 + $0x80] sm:$0xf]
  %v308 = vld [vmem:[%s1 + $0x84] sm:$0xf]
  %v309 = vld [vmem:[%s1 + $0x88] sm:$0xf]
  %v310 = vld [vmem:[%s1 + $0x8c] sm:$0xf]
  %v311 = vld [vmem:[%s1 + $0x90] sm:$0xf]
  %v312 = vld [vmem:[%s1 + $0x94] sm:$0xf]
  %v313 = vld [vmem:[%s1 + $0x98] sm:$0xf]
  %v314 = vld [vmem:[%s1 + $0x9c] sm:$0xf]
  %v315 = vpack.c.bf16 %v306, %v306
  %v324 = vunpack.c.l.b16 %v307
  %v325 = vunpack.c.l.b16 %v308
  %v326 = vunpack.c.l.b16 %v309
  %v327 = vunpack.c.l.b16 %v310
  %v328 = vunpack.c.l.b16 %v311
  %v329 = vunpack.c.l.b16 %v312
  %v330 = vunpack.c.l.b16 %v313
  %v331 = vunpack.c.l.b16 %v314
  %v332 = vpack.c.b16 %v325, %v324
  %v333 = vpack.c.b16 %v327, %v326
  %v334 = vpack.c.b16 %v329, %v328
  %v335 = vpack.c.b16 %v331, %v330
  %v341 = vsel %vm70, %v315, 0
  %343 = vmatpush.bf16.msra.mxu0 0
  %344 = vmatpush.bf16.msra.mxu0 0
  %345 = vmatpush.bf16.msra.mxu0 0
  %346 = vmatpush.bf16.msra.mxu0 0
  %347 = vmatpush.bf16.msra.mxu0 %v335
  %348 = vmatpush.bf16.msra.mxu0 %v334
  %349 = vmatpush.bf16.msra.mxu0 %v333
  %350 = vmatpush.bf16.msra.mxu0 %v332
  %351 = vmatmul.bf16.gmra.mxu0 %v341
  %v352 = vpop.f32.mrf.mxu0
  %v353 = vadd.f32 %v84, %v352
  %v354 = vpop.f32.mrf.mxu0
  %355 = vdwg.mxu0
  %s356 = scalar_lea.vmem %s3, 32
  %v357 = vld [vmem:[%s356] sm:$0xff]
  %v358 = vadd.f32 %v353, %v357
  %v359 = vtanh.pop %v358
  %v360 = vld [vmem:[%s1 + $0xa0] sm:$0xf]
  %v361 = vld [vmem:[%s1 + $0xa4] sm:$0xf]
  %v362 = vld [vmem:[%s1 + $0xa8] sm:$0xf]
  %v363 = vld [vmem:[%s1 + $0xac] sm:$0xf]
  %v364 = vld [vmem:[%s1 + $0xb0] sm:$0xf]
  %v365 = vld [vmem:[%s1 + $0xb4] sm:$0xf]
  %v366 = vld [vmem:[%s1 + $0xb8] sm:$0xf]
  %v367 = vld [vmem:[%s1 + $0xbc] sm:$0xf]
  %v368 = vpack.c.bf16 %v359, %v359
  %v377 = vunpack.c.l.b16 %v360
  %v378 = vunpack.c.l.b16 %v361
  %v379 = vunpack.c.l.b16 %v362
  %v380 = vunpack.c.l.b16 %v363
  %v381 = vunpack.c.l.b16 %v364
  %v382 = vunpack.c.l.b16 %v365
  %v383 = vunpack.c.l.b16 %v366
  %v384 = vunpack.c.l.b16 %v367
  %v385 = vpack.c.b16 %v378, %v377
  %v386 = vpack.c.b16 %v380, %v379
  %v387 = vpack.c.b16 %v382, %v381
  %v388 = vpack.c.b16 %v384, %v383
  %394 = vrot.lane.b32.xlu0 %v84, 64
  %v395 = vpop.permute.xlu0 %394
  %v398 = vsel %vm70, %v368, 0
  %400 = vmatpush.bf16.msra.mxu0 0
  %401 = vmatpush.bf16.msra.mxu0 0
  %402 = vmatpush.bf16.msra.mxu0 0
  %403 = vmatpush.bf16.msra.mxu0 0
  %404 = vmatpush.bf16.msra.mxu0 %v388
  %405 = vmatpush.bf16.msra.mxu0 %v387
  %406 = vmatpush.bf16.msra.mxu0 %v386
  %407 = vmatpush.bf16.msra.mxu0 %v385
  %408 = vmatmul.bf16.gmra.mxu0 %v398
  %v409 = vpop.f32.mrf.mxu0
  %v410 = vadd.f32 %v395, %v409
  %v411 = vpop.f32.mrf.mxu0
  %412 = vdwg.mxu0
  %s413 = scalar_lea.vmem %s3, 40
  %v414 = vld [vmem:[%s413] sm:$0xff]
  %v415 = vadd.f32 %v410, %v414
  %v416 = vtanh.pop %v415
  %v417 = vld [vmem:[%s1 + $0xc0] sm:$0xf]
  %v418 = vld [vmem:[%s1 + $0xc4] sm:$0xf]
  %v419 = vld [vmem:[%s1 + $0xc8] sm:$0xf]
  %v420 = vld [vmem:[%s1 + $0xcc] sm:$0xf]
  %v421 = vld [vmem:[%s1 + $0xd0] sm:$0xf]
  %v422 = vld [vmem:[%s1 + $0xd4] sm:$0xf]
  %v423 = vld [vmem:[%s1 + $0xd8] sm:$0xf]
  %v424 = vld [vmem:[%s1 + $0xdc] sm:$0xf]
  %v425 = vpack.c.bf16 %v416, %v416
  %v434 = vunpack.c.l.b16 %v417
  %v435 = vunpack.c.l.b16 %v418
  %v436 = vunpack.c.l.b16 %v419
  %v437 = vunpack.c.l.b16 %v420
  %v438 = vunpack.c.l.b16 %v421
  %v439 = vunpack.c.l.b16 %v422
  %v440 = vunpack.c.l.b16 %v423
  %v441 = vunpack.c.l.b16 %v424
  %v442 = vpack.c.b16 %v435, %v434
  %v443 = vpack.c.b16 %v437, %v436
  %v444 = vpack.c.b16 %v439, %v438
  %v445 = vpack.c.b16 %v441, %v440
  %v451 = vsel %vm70, %v425, 0
  %453 = vmatpush.bf16.msra.mxu0 0
  %454 = vmatpush.bf16.msra.mxu0 0
  %455 = vmatpush.bf16.msra.mxu0 0
  %456 = vmatpush.bf16.msra.mxu0 0
  %457 = vmatpush.bf16.msra.mxu0 %v445
  %458 = vmatpush.bf16.msra.mxu0 %v444
  %459 = vmatpush.bf16.msra.mxu0 %v443
  %460 = vmatpush.bf16.msra.mxu0 %v442
  %461 = vmatmul.bf16.gmra.mxu0 %v451
  %v462 = vpop.f32.mrf.mxu0
  %v463 = vadd.f32 %v97, %v462
  %v464 = vpop.f32.mrf.mxu0
  %465 = vdwg.mxu0
  %s466 = scalar_lea.vmem %s3, 48
  %v467 = vld [vmem:[%s466] sm:$0xff]
  %v468 = vadd.f32 %v463, %v467
  %v469 = vtanh.pop %v468
  %v470 = vld [vmem:[%s1 + $0xe0] sm:$0xf]
  %v471 = vld [vmem:[%s1 + $0xe4] sm:$0xf]
  %v472 = vld [vmem:[%s1 + $0xe8] sm:$0xf]
  %v473 = vld [vmem:[%s1 + $0xec] sm:$0xf]
  %v474 = vld [vmem:[%s1 + $0xf0] sm:$0xf]
  %v475 = vld [vmem:[%s1 + $0xf4] sm:$0xf]
  %v476 = vld [vmem:[%s1 + $0xf8] sm:$0xf]
  %v477 = vld [vmem:[%s1 + $0xfc] sm:$0xf]
  %v478 = vpack.c.bf16 %v469, %v469
  %v487 = vunpack.c.l.b16 %v470
  %v488 = vunpack.c.l.b16 %v471
  %v489 = vunpack.c.l.b16 %v472
  %v490 = vunpack.c.l.b16 %v473
  %v491 = vunpack.c.l.b16 %v474
  %v492 = vunpack.c.l.b16 %v475
  %v493 = vunpack.c.l.b16 %v476
  %v494 = vunpack.c.l.b16 %v477
  %v495 = vpack.c.b16 %v488, %v487
  %v496 = vpack.c.b16 %v490, %v489
  %v497 = vpack.c.b16 %v492, %v491
  %v498 = vpack.c.b16 %v494, %v493
  %504 = vrot.lane.b32.xlu0 %v97, 64
  %v505 = vpop.permute.xlu0 %504
  %v508 = vsel %vm70, %v478, 0
  %510 = vmatpush.bf16.msra.mxu0 0
  %511 = vmatpush.bf16.msra.mxu0 0
  %512 = vmatpush.bf16.msra.mxu0 0
  %513 = vmatpush.bf16.msra.mxu0 0
  %514 = vmatpush.bf16.msra.mxu0 %v498
  %515 = vmatpush.bf16.msra.mxu0 %v497
  %516 = vmatpush.bf16.msra.mxu0 %v496
  %517 = vmatpush.bf16.msra.mxu0 %v495
  %518 = vmatmul.bf16.gmra.mxu0 %v508
  %v519 = vpop.f32.mrf.mxu0
  %v520 = vadd.f32 %v505, %v519
  %v521 = vpop.f32.mrf.mxu0
  %522 = vdwg.mxu0
  %s523 = scalar_lea.vmem %s3, 56
  %v524 = vld [vmem:[%s523] sm:$0xff]
  %v525 = vadd.f32 %v520, %v524
  %v526 = vtanh.pop %v525
  %v527 = vld [vmem:[%s1 + $0x100] sm:$0xf]
  %v528 = vld [vmem:[%s1 + $0x104] sm:$0xf]
  %v529 = vld [vmem:[%s1 + $0x108] sm:$0xf]
  %v530 = vld [vmem:[%s1 + $0x10c] sm:$0xf]
  %v531 = vld [vmem:[%s1 + $0x110] sm:$0xf]
  %v532 = vld [vmem:[%s1 + $0x114] sm:$0xf]
  %v533 = vld [vmem:[%s1 + $0x118] sm:$0xf]
  %v534 = vld [vmem:[%s1 + $0x11c] sm:$0xf]
  %v535 = vpack.c.bf16 %v526, %v526
  %s536 = scalar_lea.vmem %s3, 64
  %v537 = vld [vmem:[%s536] sm:$0xff]
  %v546 = vunpack.c.l.b16 %v527
  %v547 = vunpack.c.l.b16 %v528
  %v548 = vunpack.c.l.b16 %v529
  %v549 = vunpack.c.l.b16 %v530
  %v550 = vunpack.c.l.b16 %v531
  %v551 = vunpack.c.l.b16 %v532
  %v552 = vunpack.c.l.b16 %v533
  %v553 = vunpack.c.l.b16 %v534
  %v554 = vpack.c.b16 %v547, %v546
  %v555 = vpack.c.b16 %v549, %v548
  %v556 = vpack.c.b16 %v551, %v550
  %v557 = vpack.c.b16 %v553, %v552
  %v563 = vsel %vm70, %v535, 0
  %565 = vmatpush.bf16.msra.mxu0 0
  %566 = vmatpush.bf16.msra.mxu0 0
  %567 = vmatpush.bf16.msra.mxu0 0
  %568 = vmatpush.bf16.msra.mxu0 0
  %569 = vmatpush.bf16.msra.mxu0 %v557
  %570 = vmatpush.bf16.msra.mxu0 %v556
  %571 = vmatpush.bf16.msra.mxu0 %v555
  %572 = vmatpush.bf16.msra.mxu0 %v554
  %573 = vmatmul.bf16.gmra.mxu0 %v563
  %v574 = vpop.f32.mrf.mxu0
  %v575 = vadd.f32 %v537, %v574
  %v576 = vpop.f32.mrf.mxu0
  %577 = vdwg.mxu0
  %v578 = vxor.u32 %v575, 2147483648
  %v579 = vmul.f32 %v578, 1.442695
  %v580 = vpow.pop %v579
  %v581 = vadd.f32 %v580, 1.0
  %v582 = vrcp.pop %v581
  %v583 = vmul.f32 %v581, %v582
  %v584 = vsub.f32 1.0, %v583
  %v585 = vmul.f32 %v582, %v584
  %v586 = vadd.f32 %v582, %v585
  %vm587 = vweird.f32 %v581
  %vm588 = vweird.f32 %v582
  %vm589 = vmor %vm587, %vm588
  %v590 = vsel %vm589, %v582, %v586
  %v591 = vand.u32 2147483647, %v581
  %vm592 = vcmp.eq.f32.partialorder %v591, 8.507059e+37
  %v593 = vand.u32 %v581, 2147483648
  %v594 = vor.u32 1.1754944e-38, %v593
  %v595 = vsel %vm592, %v594, %v590
  %v596 = vmul.f32 1.0, %v595
  %v597 = vmul.f32 %v596, %v526
  %v598 = vmul.f32 %v597, 0.3
  %v599 = vmul.f32 %v526, 0.7
  %v600 = vadd.f32 %v598, %v599
  %601 = vst.msk [vmem:[%s4] sm:$0xff] %vm70, %v600
  %603 = vrot.lane.b32.xlu0 %v306, 64
  %v604 = vpop.permute.xlu0 %603
  %vm606 = vcmask 1048064
  %607 = vst.msk [vmem:[%s4] sm:$0xff] %vm606, %v604
  %608 = vst.msk [vmem:[%s4 + $0x8] sm:$0xff] %vm70, %v526
  %610 = vrot.lane.b32.xlu0 %v596, 64
  %v611 = vpop.permute.xlu0 %610
  %613 = vst.msk [vmem:[%s4 + $0x8] sm:$0xff] %vm606, %v611
  // Predicated region
  $region18: #{consciousness_forward.1} parent=0 // pred_check
    _
  $region19: #{consciousness_forward.1} parent=0 // pred_check_branch
    %615 = sbr.rel (0) target = $region21
  $region20: #{consciousness_forward.1} parent=0 // pred_region
    _
  $region21: #{consciousness_forward.1} parent=0 // pred_fallthru
    _
  // Predicated region
  $region22: #{consciousness_forward.1} parent=0 // pred_check
    _
  $region23: #{consciousness_forward.1} parent=0 // pred_check_branch
    %617 = sbr.rel (0) target = $region25
  $region24: #{consciousness_forward.1} parent=0 // pred_region
    _
  $region25: #{consciousness_forward.1} parent=0 // pred_fallthru
    _

</llo_original>
